<compile_context>
chip_gen: v7x
topology: tpu7x:2x2x1
jax: 0.10.0
libtpu: 0.0.40
codegen_flags: <defaults>
</compile_context>

<pallas_src>
import numpy as np
import jax
import jax.numpy as jnp
from jax.experimental import pallas as pl
from jax.experimental.pallas import tpu as pltpu


def _round_up(x, m):
    return ((x + m - 1) // m) * m


def _mlp_softmax_kernel(x_ref,
                        w1_ref, b1_ref,
                        w2_ref, b2_ref,
                        w3_ref, b3_ref,
                        w4_ref, b4_ref,
                        o_ref):
    # bf16 operands on the MXU, f32 accumulation, f32 elementwise on the VPU.
    h = jnp.dot(x_ref[...].astype(jnp.bfloat16), w1_ref[...],
                preferred_element_type=jnp.float32) + b1_ref[...]
    h = jnp.maximum(h, 0.0)

    h = jnp.dot(h.astype(jnp.bfloat16), w2_ref[...],
                preferred_element_type=jnp.float32) + b2_ref[...]
    h = jnp.maximum(h, 0.0)

    h = jnp.dot(h.astype(jnp.bfloat16), w3_ref[...],
                preferred_element_type=jnp.float32) + b3_ref[...]
    h = jnp.maximum(h, 0.0)

    logits = jnp.dot(h.astype(jnp.bfloat16), w4_ref[...],
                     preferred_element_type=jnp.float32) + b4_ref[...]

    # numerically-stable softmax over the last (lane) axis; padded columns have
    # logit -1e30 so exp underflows to exactly 0 and does not affect the sum.
    m = jnp.max(logits, axis=-1, keepdims=True)
    e = jnp.exp(logits - m)
    denom = jnp.sum(e, axis=-1, keepdims=True)
    # exact divide so rows sum to 1 within f32 rounding (EUP is not the bottleneck)
    o_ref[...] = (e / denom).astype(o_ref.dtype)


def discrete_policy_network(x, params, *, batch_tile=2048,
                            vmem_budget_bytes=24 << 20):
    """x: [B, input_dim] float32. params: dict of [in,out] weights + [1,out] biases."""
    B, input_dim = x.shape
    output_dim = params["w4"].shape[1]
    out_pad = _round_up(output_dim, 128)      # lane-dense output block

    # ---- batch tile: big enough to amortize step overhead, but always >=2
    # grid steps when possible (v7x megacore), multiple of 8, within VMEM ----
    bt = min(int(batch_tile), _round_up(pl.cdiv(B, 2), 8))
    bt = max(8, (bt // 8) * 8)

    def _vmem_estimate(bt_):
        lanes_in = _round_up(input_dim, 128)
        x_bytes = 2 * bt_ * lanes_in * 4              # double-buffered x tile
        o_bytes = 2 * bt_ * out_pad * 4               # double-buffered out tile
        act_bytes = 4 * bt_ * 128 * 4                 # activation intermediates
        w_bytes = 2 * (input_dim * 64 + 64 * 128 + 128 * 64 + 64 * out_pad)
        b_bytes = 4 * (64 + 128 + 64 + out_pad)
        return x_bytes + o_bytes + act_bytes + w_bytes + b_bytes

    while bt > 8 and _vmem_estimate(bt) > vmem_budget_bytes:
        bt = max(8, (bt // 2 // 8) * 8)

    b_pad = pl.cdiv(B, bt) * bt
    if b_pad != B:
        x = jnp.pad(x, ((0, b_pad - B), (0, 0)))
    grid = (b_pad // bt,)

    # ---- weights as bf16 MXU operands (converted once, outside the kernel);
    # biases stay f32 (added to the f32 accumulator). fc4 is lane-padded. ----
    w4 = params["w4"]
    b4 = params["b4"]
    if out_pad != output_dim:
        w4 = jnp.pad(w4, ((0, 0), (0, out_pad - output_dim)))  # zero columns
        b4 = jnp.pad(b4, ((0, 0), (0, out_pad - output_dim)),
                     constant_values=-1e30)                     # exp -> 0 exactly
    w1 = params["w1"].astype(jnp.bfloat16)
    w2 = params["w2"].astype(jnp.bfloat16)
    w3 = params["w3"].astype(jnp.bfloat16)
    w4 = w4.astype(jnp.bfloat16)
    b1, b2, b3 = params["b1"], params["b2"], params["b3"]

    def _const_spec(shape):
        # constant index_map -> no re-DMA needed; single-buffer to save VMEM
        try:
            return pl.BlockSpec(shape, lambda i: (0, 0),
                                pipeline_mode=pl.Buffered(1))
        except TypeError:
            return pl.BlockSpec(shape, lambda i: (0, 0))

    grid_spec = pltpu.PrefetchScalarGridSpec(
        num_scalar_prefetch=0,
        grid=grid,
        in_specs=[
            pl.BlockSpec((bt, input_dim), lambda i: (i, 0)),
            _const_spec(w1.shape), _const_spec(b1.shape),
            _const_spec(w2.shape), _const_spec(b2.shape),
            _const_spec(w3.shape), _const_spec(b3.shape),
            _const_spec(w4.shape), _const_spec(b4.shape),
        ],
        out_specs=pl.BlockSpec((bt, out_pad), lambda i: (i, 0)),
    )

    # advisory cost hint for XLA's scheduler
    flops = 2 * b_pad * (input_dim * 64 + 64 * 128 + 128 * 64 + 64 * out_pad)
    weight_bytes = (input_dim * 64 + 64 * 128 + 128 * 64 + 64 * out_pad) * 2 \
        + (64 + 128 + 64 + out_pad) * 4
    bytes_accessed = b_pad * input_dim * 4 + b_pad * out_pad * 4 + weight_bytes
    cost = pl.CostEstimate(flops=flops,
                           transcendentals=b_pad * out_pad,
                           bytes_accessed=bytes_accessed)

    vmem_limit = int(min(max(32 << 20, 2 * _vmem_estimate(bt)), 64 << 20))

    out = pl.pallas_call(
        _mlp_softmax_kernel,
        out_shape=jax.ShapeDtypeStruct((b_pad, out_pad), jnp.float32),
        grid_spec=grid_spec,
        compiler_params=pltpu.CompilerParams(
            dimension_semantics=("parallel",),
            vmem_limit_bytes=vmem_limit),
        cost_estimate=cost,
    )(x, w1, b1, w2, b2, w3, b3, w4, b4)

    return out[:B, :output_dim]


def init_params(key, input_dim, output_dim):
    """Deterministic init; layer l stored as W[in, out], b[1, out] (f32 master copy)."""
    dims = [(input_dim, 64), (64, 128), (128, 64), (64, output_dim)]
    params = {}
    keys = jax.random.split(key, 2 * len(dims))
    for idx, (fan_in, fan_out) in enumerate(dims):
        bound = 1.0 / np.sqrt(fan_in)  # torch.nn.Linear default init range
        w = jax.random.uniform(keys[2 * idx], (fan_in, fan_out),
                               minval=-bound, maxval=bound, dtype=jnp.float32)
        b = jax.random.uniform(keys[2 * idx + 1], (1, fan_out),
                               minval=-bound, maxval=bound, dtype=jnp.float32)
        params[f"w{idx + 1}"] = w
        params[f"b{idx + 1}"] = b
    return params


def _reference(x, p):
    h = jax.nn.relu(x @ p["w1"] + p["b1"])
    h = jax.nn.relu(h @ p["w2"] + p["b2"])
    h = jax.nn.relu(h @ p["w3"] + p["b3"])
    return jax.nn.softmax(h @ p["w4"] + p["b4"], axis=-1)


if __name__ == "__main__":
    key = jax.random.PRNGKey(0)
    k_x, k_p = jax.random.split(key)

    # small shapes; batch=50 exercises the multi-block grid (>=2 steps for
    # megacore), the batch pad/slice path, and the lane-padded (8->128) output.
    batch, input_dim, output_dim = 50, 32, 8
    x = jax.random.normal(k_x, (batch, input_dim), dtype=jnp.float32)
    params = init_params(k_p, input_dim, output_dim)

    out = discrete_policy_network(x, params)
    out = jax.block_until_ready(out)
    assert out.shape == (batch, output_dim)

    ref = _reference(x, params)  # f32 reference; kernel uses bf16 matmul operands
    np.testing.assert_allclose(np.asarray(out), np.asarray(ref), rtol=2e-2, atol=2e-3)
    # rows of a softmax must sum to 1 (exact divide -> f32-rounding-level error)
    np.testing.assert_allclose(np.asarray(out).sum(-1), np.ones(batch), rtol=0, atol=1e-4)

    print("KERNEL_OK")
</pallas_src>

<mosaic_0001>
module attributes {stable_mosaic.version = 11 : i64} {
  func.func @_mlp_softmax_kernel(%arg0: i32, %arg1: memref<32x32xf32, #tpu.memory_space<vmem>>, %arg2: memref<32x64xbf16, #tpu.memory_space<vmem>>, %arg3: memref<1x64xf32, #tpu.memory_space<vmem>>, %arg4: memref<64x128xbf16, #tpu.memory_space<vmem>>, %arg5: memref<1x128xf32, #tpu.memory_space<vmem>>, %arg6: memref<128x64xbf16, #tpu.memory_space<vmem>>, %arg7: memref<1x64xf32, #tpu.memory_space<vmem>>, %arg8: memref<64x128xbf16, #tpu.memory_space<vmem>>, %arg9: memref<1x128xf32, #tpu.memory_space<vmem>>, %arg10: memref<32x128xf32, #tpu.memory_space<vmem>>) attributes {dimension_semantics = [#tpu.dimension_semantics<parallel>], iteration_bounds = array<i64: 2>, scalar_prefetch = 0 : i64, scratch_operands = 0 : i64, tpu.core_type = #tpu.core_type<tc>, window_params = [{transform_indices = @transform_0, window_bounds = array<i64: 32, 32>}, {pipeline_mode = #tpu.pipeline_mode<synchronous>, transform_indices = @transform_1, window_bounds = array<i64: 32, 64>}, {pipeline_mode = #tpu.pipeline_mode<synchronous>, transform_indices = @transform_2, window_bounds = array<i64: 1, 64>}, {pipeline_mode = #tpu.pipeline_mode<synchronous>, transform_indices = @transform_3, window_bounds = array<i64: 64, 128>}, {pipeline_mode = #tpu.pipeline_mode<synchronous>, transform_indices = @transform_4, window_bounds = array<i64: 1, 128>}, {pipeline_mode = #tpu.pipeline_mode<synchronous>, transform_indices = @transform_5, window_bounds = array<i64: 128, 64>}, {pipeline_mode = #tpu.pipeline_mode<synchronous>, transform_indices = @transform_6, window_bounds = array<i64: 1, 64>}, {pipeline_mode = #tpu.pipeline_mode<synchronous>, transform_indices = @transform_7, window_bounds = array<i64: 64, 128>}, {pipeline_mode = #tpu.pipeline_mode<synchronous>, transform_indices = @transform_8, window_bounds = array<i64: 1, 128>}, {transform_indices = @transform_9, window_bounds = array<i64: 32, 128>}]} {
    %c0 = arith.constant 0 : index
    %c0_0 = arith.constant 0 : index
    %0 = vector.load %arg1[%c0, %c0_0] : memref<32x32xf32, #tpu.memory_space<vmem>>, vector<32x32xf32>
    %1 = arith.truncf %0 : vector<32x32xf32> to vector<32x32xbf16>
    %c0_1 = arith.constant 0 : index
    %c0_2 = arith.constant 0 : index
    %2 = vector.load %arg2[%c0_1, %c0_2] : memref<32x64xbf16, #tpu.memory_space<vmem>>, vector<32x64xbf16>
    %cst = arith.constant dense<0.000000e+00> : vector<32x64xf32>
    %3 = tpu.matmul %1, %2, %cst {dimension_numbers = #tpu.dot_dimension_numbers<[1], [0], [0], [1], [0, 0, 1, 1], [], []>} : vector<32x32xbf16>, vector<32x64xbf16>, vector<32x64xf32> -> vector<32x64xf32>
    %c0_3 = arith.constant 0 : index
    %c0_4 = arith.constant 0 : index
    %4 = vector.load %arg3[%c0_3, %c0_4] : memref<1x64xf32, #tpu.memory_space<vmem>>, vector<1x64xf32>
    %5 = vector.broadcast %4 : vector<1x64xf32> to vector<32x64xf32>
    %6 = arith.addf %3, %5 : vector<32x64xf32>
    %cst_5 = arith.constant 0.000000e+00 : f32
    %7 = vector.broadcast %cst_5 : f32 to vector<32x64xf32>
    %8 = arith.maximumf %6, %7 : vector<32x64xf32>
    %9 = arith.truncf %8 : vector<32x64xf32> to vector<32x64xbf16>
    %c0_6 = arith.constant 0 : index
    %c0_7 = arith.constant 0 : index
    %10 = vector.load %arg4[%c0_6, %c0_7] : memref<64x128xbf16, #tpu.memory_space<vmem>>, vector<64x128xbf16>
    %cst_8 = arith.constant dense<0.000000e+00> : vector<32x128xf32>
    %11 = tpu.matmul %9, %10, %cst_8 {dimension_numbers = #tpu.dot_dimension_numbers<[1], [0], [0], [1], [0, 0, 1, 1], [], []>} : vector<32x64xbf16>, vector<64x128xbf16>, vector<32x128xf32> -> vector<32x128xf32>
    %c0_9 = arith.constant 0 : index
    %c0_10 = arith.constant 0 : index
    %12 = vector.load %arg5[%c0_9, %c0_10] : memref<1x128xf32, #tpu.memory_space<vmem>>, vector<1x128xf32>
    %13 = vector.broadcast %12 : vector<1x128xf32> to vector<32x128xf32>
    %14 = arith.addf %11, %13 : vector<32x128xf32>
    %cst_11 = arith.constant 0.000000e+00 : f32
    %15 = vector.broadcast %cst_11 : f32 to vector<32x128xf32>
    %16 = arith.maximumf %14, %15 : vector<32x128xf32>
    %17 = arith.truncf %16 : vector<32x128xf32> to vector<32x128xbf16>
    %c0_12 = arith.constant 0 : index
    %c0_13 = arith.constant 0 : index
    %18 = vector.load %arg6[%c0_12, %c0_13] : memref<128x64xbf16, #tpu.memory_space<vmem>>, vector<128x64xbf16>
    %cst_14 = arith.constant dense<0.000000e+00> : vector<32x64xf32>
    %19 = tpu.matmul %17, %18, %cst_14 {dimension_numbers = #tpu.dot_dimension_numbers<[1], [0], [0], [1], [0, 0, 1, 1], [], []>} : vector<32x128xbf16>, vector<128x64xbf16>, vector<32x64xf32> -> vector<32x64xf32>
    %c0_15 = arith.constant 0 : index
    %c0_16 = arith.constant 0 : index
    %20 = vector.load %arg7[%c0_15, %c0_16] : memref<1x64xf32, #tpu.memory_space<vmem>>, vector<1x64xf32>
    %21 = vector.broadcast %20 : vector<1x64xf32> to vector<32x64xf32>
    %22 = arith.addf %19, %21 : vector<32x64xf32>
    %cst_17 = arith.constant 0.000000e+00 : f32
    %23 = vector.broadcast %cst_17 : f32 to vector<32x64xf32>
    %24 = arith.maximumf %22, %23 : vector<32x64xf32>
    %25 = arith.truncf %24 : vector<32x64xf32> to vector<32x64xbf16>
    %c0_18 = arith.constant 0 : index
    %c0_19 = arith.constant 0 : index
    %26 = vector.load %arg8[%c0_18, %c0_19] : memref<64x128xbf16, #tpu.memory_space<vmem>>, vector<64x128xbf16>
    %cst_20 = arith.constant dense<0.000000e+00> : vector<32x128xf32>
    %27 = tpu.matmul %25, %26, %cst_20 {dimension_numbers = #tpu.dot_dimension_numbers<[1], [0], [0], [1], [0, 0, 1, 1], [], []>} : vector<32x64xbf16>, vector<64x128xbf16>, vector<32x128xf32> -> vector<32x128xf32>
    %c0_21 = arith.constant 0 : index
    %c0_22 = arith.constant 0 : index
    %28 = vector.load %arg9[%c0_21, %c0_22] : memref<1x128xf32, #tpu.memory_space<vmem>>, vector<1x128xf32>
    %29 = vector.broadcast %28 : vector<1x128xf32> to vector<32x128xf32>
    %30 = arith.addf %27, %29 : vector<32x128xf32>
    %cst_23 = arith.constant dense<0xFF800000> : vector<32xf32>
    %31 = vector.multi_reduction <maximumf>, %30, %cst_23 [1] : vector<32x128xf32> to vector<32xf32>
    %32 = vector.shape_cast %31 : vector<32xf32> to vector<32x1xf32>
    %33 = vector.broadcast %32 : vector<32x1xf32> to vector<32x128xf32>
    %34 = arith.subf %30, %33 : vector<32x128xf32>
    %35 = math.exp %34 : vector<32x128xf32>
    %cst_24 = arith.constant dense<0.000000e+00> : vector<32xf32>
    %36 = vector.multi_reduction <add>, %35, %cst_24 [1] : vector<32x128xf32> to vector<32xf32>
    %37 = vector.shape_cast %36 : vector<32xf32> to vector<32x1xf32>
    %38 = vector.broadcast %37 : vector<32x1xf32> to vector<32x128xf32>
    %39 = arith.divf %35, %38 : vector<32x128xf32>
    %c0_25 = arith.constant 0 : index
    %c0_26 = arith.constant 0 : index
    %40 = vector.load %arg10[%c0_25, %c0_26] : memref<32x128xf32, #tpu.memory_space<vmem>>, vector<32x128xf32>
    tpu.vector_store %arg10[%c0_25, %c0_26], %39 {strides = array<i32>} : memref<32x128xf32, #tpu.memory_space<vmem>>, vector<32x128xf32>,
    return
  }
  func.func @transform_0(%arg0: i32) -> (i32, i32) {
    %c0_i32 = arith.constant 0 : i32
    %c0_i32_0 = arith.constant 0 : i32
    return %arg0, %c0_i32 : i32, i32
  }
  func.func @transform_1(%arg0: i32) -> (i32, i32) {
    %c0_i32 = arith.constant 0 : i32
    %c0_i32_0 = arith.constant 0 : i32
    %c0_i32_1 = arith.constant 0 : i32
    return %c0_i32, %c0_i32_0 : i32, i32
  }
  func.func @transform_2(%arg0: i32) -> (i32, i32) {
    %c0_i32 = arith.constant 0 : i32
    %c0_i32_0 = arith.constant 0 : i32
    %c0_i32_1 = arith.constant 0 : i32
    return %c0_i32, %c0_i32_0 : i32, i32
  }
  func.func @transform_3(%arg0: i32) -> (i32, i32) {
    %c0_i32 = arith.constant 0 : i32
    %c0_i32_0 = arith.constant 0 : i32
    %c0_i32_1 = arith.constant 0 : i32
    return %c0_i32, %c0_i32_0 : i32, i32
  }
  func.func @transform_4(%arg0: i32) -> (i32, i32) {
    %c0_i32 = arith.constant 0 : i32
    %c0_i32_0 = arith.constant 0 : i32
    %c0_i32_1 = arith.constant 0 : i32
    return %c0_i32, %c0_i32_0 : i32, i32
  }
  func.func @transform_5(%arg0: i32) -> (i32, i32) {
    %c0_i32 = arith.constant 0 : i32
    %c0_i32_0 = arith.constant 0 : i32
    %c0_i32_1 = arith.constant 0 : i32
    return %c0_i32, %c0_i32_0 : i32, i32
  }
  func.func @transform_6(%arg0: i32) -> (i32, i32) {
    %c0_i32 = arith.constant 0 : i32
    %c0_i32_0 = arith.constant 0 : i32
    %c0_i32_1 = arith.constant 0 : i32
    return %c0_i32, %c0_i32_0 : i32, i32
  }
  func.func @transform_7(%arg0: i32) -> (i32, i32) {
    %c0_i32 = arith.constant 0 : i32
    %c0_i32_0 = arith.constant 0 : i32
    %c0_i32_1 = arith.constant 0 : i32
    return %c0_i32, %c0_i32_0 : i32, i32
  }
  func.func @transform_8(%arg0: i32) -> (i32, i32) {
    %c0_i32 = arith.constant 0 : i32
    %c0_i32_0 = arith.constant 0 : i32
    %c0_i32_1 = arith.constant 0 : i32
    return %c0_i32, %c0_i32_0 : i32, i32
  }
  func.func @transform_9(%arg0: i32) -> (i32, i32) {
    %c0_i32 = arith.constant 0 : i32
    %c0_i32_0 = arith.constant 0 : i32
    return %arg0, %c0_i32 : i32, i32
  }
}

</mosaic_0001>

<llo_original>
// kernel: tpu_custom_call.1
$region0: #{tpu_custom_call.1}
  #allocation0 [shape = 'u32[]', space=smem, size = 0x4, offset = 0x4, fixed_abs, tag = 'smem constant byte address 0x4 - core index']
  #allocation1 [shape = 'u32[144,128]{1,0:T(1,128)}', space=vmem, size = 0x12000, scoped, tag = 'internal scratch']
  %s0 = inlined_call_operand.vmem [shape: f32[64,32], index: 0, kind: input, shape index: {}]
  %s1 = inlined_call_operand.vmem [shape: bf16[32,64], index: 1, kind: input, shape index: {}]
  %s2 = inlined_call_operand.vmem [shape: f32[1,64], index: 2, kind: input, shape index: {}]
  %s3 = inlined_call_operand.vmem [shape: bf16[64,128], index: 3, kind: input, shape index: {}]
  %s4 = inlined_call_operand.vmem [shape: f32[1,128], index: 4, kind: input, shape index: {}]
  %s5 = inlined_call_operand.vmem [shape: bf16[128,64], index: 5, kind: input, shape index: {}]
  %s6 = inlined_call_operand.vmem [shape: f32[1,64], index: 6, kind: input, shape index: {}]
  %s7 = inlined_call_operand.vmem [shape: bf16[64,128], index: 7, kind: input, shape index: {}]
  %s8 = inlined_call_operand.vmem [shape: f32[1,128], index: 8, kind: input, shape index: {}]
  %s9 = inlined_call_operand.hbm [shape: f32[64,128], index: 9, kind: output, shape index: {}]
  %s10 = sld [smem:[#allocation0]]
  $region69: #{tpu_custom_call.1} parent=0
    _
  %s12 = ssub.s32 1, %s10
  %s13 = scalar_select 0, %s12, %s10
  $region1: #{tpu_custom_call.1} parent=0
    #allocation2 [shape = 'u8[32768]{0}', space=vmem, size = 0x8000, scoped, tag = 'output window, operand 0']
    #allocation3 [shape = 's32[2]{0}', space=sflag, size = 0x8, scoped, tag = 'scoped memory for tpu_custom_call.1']
    %14 = vsyncpa [#allocation3], 0
    %s15 = scalar_lea.sflag [#allocation3], 1
    %16 = vsyncpa %s15, 0
    loop: start=0, step=1, limit=4
    $region2: #{tpu_custom_call.1} parent=1 // loop_pre_header
      _
    $region3: #{tpu_custom_call.1} parent=1 // loop_header
      %s18 = sphi 0, %s22
      %p19 = scmp.ge.s32.totalorder %s18, 4
      %s28 = sphi 0, %s30
      %s31 = sphi 0, %s28
      %s32 = sphi 0, %s31
      %s48 = sphi 0, %s32
      %s52 = sphi 0, %s52
      %s54 = sphi 0, %s52
      %s55 = sphi 0, %s54
      %s69 = sphi 0, %s55
      %s73 = sphi 0, %s73
      %s75 = sphi 0, %s73
      %s76 = sphi 0, %s75
      %s90 = sphi 0, %s76
      %s94 = sphi 0, %s94
      %s96 = sphi 0, %s94
      %s97 = sphi 0, %s96
      %s111 = sphi 0, %s97
      %s115 = sphi 0, %s115
      %s117 = sphi 0, %s115
      %s118 = sphi 0, %s117
      %s132 = sphi 0, %s118
      %s136 = sphi 0, %s136
      %s138 = sphi 0, %s136
      %s139 = sphi 0, %s138
      %s153 = sphi 0, %s139
      %s157 = sphi 0, %s157
      %s159 = sphi 0, %s157
      %s160 = sphi 0, %s159
      %s174 = sphi 0, %s160
      %s178 = sphi 0, %s178
      %s180 = sphi 0, %s178
      %s181 = sphi 0, %s180
      %s195 = sphi 0, %s181
      %s199 = sphi 0, %s199
      %s201 = sphi 0, %s199
      %s202 = sphi 0, %s201
      %s216 = sphi 0, %s202
      %s222 = sphi 0, %s224
      %s225 = sphi 0, %s222
      %s226 = sphi 0, %s225
      %s242 = sphi 0, %s226
    $region4: #{tpu_custom_call.1} parent=1 // loop_header_branch
      %21 = sbr.rel (%p19) target = $region8
    $region5: #{tpu_custom_call.1} parent=1 // loop_body
      %s23 = ssub.s32 %s18, 1
      %s24 = ssub.s32 %s18, 2
      %s25 = sadd.s32 %s18, 1
      %s26 = ssub.s32 %s18, %s25
      %p27 = scmp.eq.s32.totalorder %s26, 0
      %s29 = sadd.s32 %s28, 1
      %s30 = scalar_select %p27, %s28, %s29
      %p33 = pneg %p27
      %p34 = scmp.eq.s32.totalorder %s18, 1
      %p35 = por %p33, %p34
      %p36 = scmp.ne.s32.totalorder %s28, %s31
      %p37 = scmp.eq.s32.totalorder %s18, 0
      %p38 = por %p36, %p37
      %p39 = scmp.ne.s32.totalorder %s28, %s31
      %p40 = scmp.eq.s32.totalorder %s23, 1
      %p41 = por %p39, %p40
      %p42 = scmp.ne.s32.totalorder %s31, %s32
      %p43 = scmp.eq.s32.totalorder %s23, 0
      %p44 = por %p42, %p43
      %p45 = scmp.ne.s32.totalorder %s31, %s32
      %p46 = scmp.eq.s32.totalorder %s24, 1
      %p47 = por %p45, %p46
      %p49 = scmp.ne.s32.totalorder %s32, %s48
      %p50 = scmp.eq.s32.totalorder %s24, 0
      %p51 = por %p49, %p50
      %s53 = sadd.s32 %s52, 1
      %p56 = scmp.eq.s32.totalorder %s18, 1
      %p57 = scmp.ne.s32.totalorder %s52, %s54
      %p58 = scmp.eq.s32.totalorder %s18, 0
      %p59 = por %p57, %p58
      %p60 = scmp.ne.s32.totalorder %s52, %s54
      %p61 = scmp.eq.s32.totalorder %s23, 1
      %p62 = por %p60, %p61
      %p63 = scmp.ne.s32.totalorder %s54, %s55
      %p64 = scmp.eq.s32.totalorder %s23, 0
      %p65 = por %p63, %p64
      %p66 = scmp.ne.s32.totalorder %s54, %s55
      %p67 = scmp.eq.s32.totalorder %s24, 1
      %p68 = por %p66, %p67
      %p70 = scmp.ne.s32.totalorder %s55, %s69
      %p71 = scmp.eq.s32.totalorder %s24, 0
      %p72 = por %p70, %p71
      %s74 = sadd.s32 %s73, 1
      %p77 = scmp.eq.s32.totalorder %s18, 1
      %p78 = scmp.ne.s32.totalorder %s73, %s75
      %p79 = scmp.eq.s32.totalorder %s18, 0
      %p80 = por %p78, %p79
      %p81 = scmp.ne.s32.totalorder %s73, %s75
      %p82 = scmp.eq.s32.totalorder %s23, 1
      %p83 = por %p81, %p82
      %p84 = scmp.ne.s32.totalorder %s75, %s76
      %p85 = scmp.eq.s32.totalorder %s23, 0
      %p86 = por %p84, %p85
      %p87 = scmp.ne.s32.totalorder %s75, %s76
      %p88 = scmp.eq.s32.totalorder %s24, 1
      %p89 = por %p87, %p88
      %p91 = scmp.ne.s32.totalorder %s76, %s90
      %p92 = scmp.eq.s32.totalorder %s24, 0
      %p93 = por %p91, %p92
      %s95 = sadd.s32 %s94, 1
      %p98 = scmp.eq.s32.totalorder %s18, 1
      %p99 = scmp.ne.s32.totalorder %s94, %s96
      %p100 = scmp.eq.s32.totalorder %s18, 0
      %p101 = por %p99, %p100
      %p102 = scmp.ne.s32.totalorder %s94, %s96
      %p103 = scmp.eq.s32.totalorder %s23, 1
      %p104 = por %p102, %p103
      %p105 = scmp.ne.s32.totalorder %s96, %s97
      %p106 = scmp.eq.s32.totalorder %s23, 0
      %p107 = por %p105, %p106
      %p108 = scmp.ne.s32.totalorder %s96, %s97
      %p109 = scmp.eq.s32.totalorder %s24, 1
      %p110 = por %p108, %p109
      %p112 = scmp.ne.s32.totalorder %s97, %s111
      %p113 = scmp.eq.s32.totalorder %s24, 0
      %p114 = por %p112, %p113
      %s116 = sadd.s32 %s115, 1
      %p119 = scmp.eq.s32.totalorder %s18, 1
      %p120 = scmp.ne.s32.totalorder %s115, %s117
      %p121 = scmp.eq.s32.totalorder %s18, 0
      %p122 = por %p120, %p121
      %p123 = scmp.ne.s32.totalorder %s115, %s117
      %p124 = scmp.eq.s32.totalorder %s23, 1
      %p125 = por %p123, %p124
      %p126 = scmp.ne.s32.totalorder %s117, %s118
      %p127 = scmp.eq.s32.totalorder %s23, 0
      %p128 = por %p126, %p127
      %p129 = scmp.ne.s32.totalorder %s117, %s118
      %p130 = scmp.eq.s32.totalorder %s24, 1
      %p131 = por %p129, %p130
      %p133 = scmp.ne.s32.totalorder %s118, %s132
      %p134 = scmp.eq.s32.totalorder %s24, 0
      %p135 = por %p133, %p134
      %s137 = sadd.s32 %s136, 1
      %p140 = scmp.eq.s32.totalorder %s18, 1
      %p141 = scmp.ne.s32.totalorder %s136, %s138
      %p142 = scmp.eq.s32.totalorder %s18, 0
      %p143 = por %p141, %p142
      %p144 = scmp.ne.s32.totalorder %s136, %s138
      %p145 = scmp.eq.s32.totalorder %s23, 1
      %p146 = por %p144, %p145
      %p147 = scmp.ne.s32.totalorder %s138, %s139
      %p148 = scmp.eq.s32.totalorder %s23, 0
      %p149 = por %p147, %p148
      %p150 = scmp.ne.s32.totalorder %s138, %s139
      %p151 = scmp.eq.s32.totalorder %s24, 1
      %p152 = por %p150, %p151
      %p154 = scmp.ne.s32.totalorder %s139, %s153
      %p155 = scmp.eq.s32.totalorder %s24, 0
      %p156 = por %p154, %p155
      %s158 = sadd.s32 %s157, 1
      %p161 = scmp.eq.s32.totalorder %s18, 1
      %p162 = scmp.ne.s32.totalorder %s157, %s159
      %p163 = scmp.eq.s32.totalorder %s18, 0
      %p164 = por %p162, %p163
      %p165 = scmp.ne.s32.totalorder %s157, %s159
      %p166 = scmp.eq.s32.totalorder %s23, 1
      %p167 = por %p165, %p166
      %p168 = scmp.ne.s32.totalorder %s159, %s160
      %p169 = scmp.eq.s32.totalorder %s23, 0
      %p170 = por %p168, %p169
      %p171 = scmp.ne.s32.totalorder %s159, %s160
      %p172 = scmp.eq.s32.totalorder %s24, 1
      %p173 = por %p171, %p172
      %p175 = scmp.ne.s32.totalorder %s160, %s174
      %p176 = scmp.eq.s32.totalorder %s24, 0
      %p177 = por %p175, %p176
      %s179 = sadd.s32 %s178, 1
      %p182 = scmp.eq.s32.totalorder %s18, 1
      %p183 = scmp.ne.s32.totalorder %s178, %s180
      %p184 = scmp.eq.s32.totalorder %s18, 0
      %p185 = por %p183, %p184
      %p186 = scmp.ne.s32.totalorder %s178, %s180
      %p187 = scmp.eq.s32.totalorder %s23, 1
      %p188 = por %p186, %p187
      %p189 = scmp.ne.s32.totalorder %s180, %s181
      %p190 = scmp.eq.s32.totalorder %s23, 0
      %p191 = por %p189, %p190
      %p192 = scmp.ne.s32.totalorder %s180, %s181
      %p193 = scmp.eq.s32.totalorder %s24, 1
      %p194 = por %p192, %p193
      %p196 = scmp.ne.s32.totalorder %s181, %s195
      %p197 = scmp.eq.s32.totalorder %s24, 0
      %p198 = por %p196, %p197
      %s200 = sadd.s32 %s199, 1
      %p203 = scmp.eq.s32.totalorder %s18, 1
      %p204 = scmp.ne.s32.totalorder %s199, %s201
      %p205 = scmp.eq.s32.totalorder %s18, 0
      %p206 = por %p204, %p205
      %p207 = scmp.ne.s32.totalorder %s199, %s201
      %p208 = scmp.eq.s32.totalorder %s23, 1
      %p209 = por %p207, %p208
      %p210 = scmp.ne.s32.totalorder %s201, %s202
      %p211 = scmp.eq.s32.totalorder %s23, 0
      %p212 = por %p210, %p211
      %p213 = scmp.ne.s32.totalorder %s201, %s202
      %p214 = scmp.eq.s32.totalorder %s24, 1
      %p215 = por %p213, %p214
      %p217 = scmp.ne.s32.totalorder %s202, %s216
      %p218 = scmp.eq.s32.totalorder %s24, 0
      %p219 = por %p217, %p218
      %s220 = ssub.s32 %s18, %s25
      %p221 = scmp.eq.s32.totalorder %s220, 0
      %s223 = sadd.s32 %s222, 1
      %s224 = scalar_select %p221, %s222, %s223
      %p227 = pneg %p221
      %p228 = scmp.eq.s32.totalorder %s18, 1
      %p229 = por %p227, %p228
      %p230 = scmp.ne.s32.totalorder %s222, %s225
      %p231 = scmp.eq.s32.totalorder %s18, 0
      %p232 = por %p230, %p231
      %p233 = scmp.ne.s32.totalorder %s222, %s225
      %p234 = scmp.eq.s32.totalorder %s23, 1
      %p235 = por %p233, %p234
      %p236 = scmp.ne.s32.totalorder %s225, %s226
      %p237 = scmp.eq.s32.totalorder %s23, 0
      %p238 = por %p236, %p237
      %p239 = scmp.ne.s32.totalorder %s225, %s226
      %p240 = scmp.eq.s32.totalorder %s24, 1
      %p241 = por %p239, %p240
      %p243 = scmp.ne.s32.totalorder %s226, %s242
      %p244 = scmp.eq.s32.totalorder %s24, 0
      %p245 = por %p243, %p244
      %p246 = scmp.le.s32.totalorder 1, %s18
      %p247 = scmp.lt.s32.totalorder %s18, 3
      %p248 = pnand %p246, %p247
      %p249 = pneg %p248
      // Predicated region
      $region9: #{tpu_custom_call.1} parent=5 // pred_check
        _
      $region10: #{tpu_custom_call.1} parent=5 // pred_check_branch
        %251 = sbr.rel (%p248) target = $region12
      $region11: #{tpu_custom_call.1} parent=5 // pred_region
        %s252 = ssub.s32 %s18, 1
        // Predicated region
        $region13: #{tpu_custom_call.1} parent=11 // pred_check
          %p253 = pneg %p65
        $region14: #{tpu_custom_call.1} parent=11 // pred_check_branch
          %255 = sbr.rel (%p253) target = $region16
        $region15: #{tpu_custom_call.1} parent=11 // pred_region
          _
        $region16: #{tpu_custom_call.1} parent=11 // pred_fallthru
          _
        // Predicated region
        $region17: #{tpu_custom_call.1} parent=11 // pred_check
          %p256 = pneg %p86
        $region18: #{tpu_custom_call.1} parent=11 // pred_check_branch
          %258 = sbr.rel (%p256) target = $region20
        $region19: #{tpu_custom_call.1} parent=11 // pred_region
          _
        $region20: #{tpu_custom_call.1} parent=11 // pred_fallthru
          _
        // Predicated region
        $region21: #{tpu_custom_call.1} parent=11 // pred_check
          %p259 = pneg %p107
        $region22: #{tpu_custom_call.1} parent=11 // pred_check_branch
          %261 = sbr.rel (%p259) target = $region24
        $region23: #{tpu_custom_call.1} parent=11 // pred_region
          _
        $region24: #{tpu_custom_call.1} parent=11 // pred_fallthru
          _
        // Predicated region
        $region25: #{tpu_custom_call.1} parent=11 // pred_check
          %p262 = pneg %p128
        $region26: #{tpu_custom_call.1} parent=11 // pred_check_branch
          %264 = sbr.rel (%p262) target = $region28
        $region27: #{tpu_custom_call.1} parent=11 // pred_region
          _
        $region28: #{tpu_custom_call.1} parent=11 // pred_fallthru
          _
        // Predicated region
        $region29: #{tpu_custom_call.1} parent=11 // pred_check
          %p265 = pneg %p149
        $region30: #{tpu_custom_call.1} parent=11 // pred_check_branch
          %267 = sbr.rel (%p265) target = $region32
        $region31: #{tpu_custom_call.1} parent=11 // pred_region
          _
        $region32: #{tpu_custom_call.1} parent=11 // pred_fallthru
          _
        // Predicated region
        $region33: #{tpu_custom_call.1} parent=11 // pred_check
          %p268 = pneg %p170
        $region34: #{tpu_custom_call.1} parent=11 // pred_check_branch
          %270 = sbr.rel (%p268) target = $region36
        $region35: #{tpu_custom_call.1} parent=11 // pred_region
          _
        $region36: #{tpu_custom_call.1} parent=11 // pred_fallthru
          _
        // Predicated region
        $region37: #{tpu_custom_call.1} parent=11 // pred_check
          %p271 = pneg %p191
        $region38: #{tpu_custom_call.1} parent=11 // pred_check_branch
          %273 = sbr.rel (%p271) target = $region40
        $region39: #{tpu_custom_call.1} parent=11 // pred_region
          _
        $region40: #{tpu_custom_call.1} parent=11 // pred_fallthru
          _
        // Predicated region
        $region41: #{tpu_custom_call.1} parent=11 // pred_check
          %p274 = pneg %p212
        $region42: #{tpu_custom_call.1} parent=11 // pred_check_branch
          %276 = sbr.rel (%p274) target = $region44
        $region43: #{tpu_custom_call.1} parent=11 // pred_region
          _
        $region44: #{tpu_custom_call.1} parent=11 // pred_fallthru
          _
      $region12: #{tpu_custom_call.1} parent=5 // pred_fallthru
        _
      %p277 = scmp.lt.s32.totalorder %s18, 2
      // Predicated region
      $region45: #{tpu_custom_call.1} parent=5 // pred_check
        %p278 = pneg %p277
      $region46: #{tpu_custom_call.1} parent=5 // pred_check_branch
        %280 = sbr.rel (%p278) target = $region48
      $region47: #{tpu_custom_call.1} parent=5 // pred_region
        // Predicated region
        $region49: #{tpu_custom_call.1} parent=47 // pred_check
          %p281 = pneg %p38
        $region50: #{tpu_custom_call.1} parent=47 // pred_check_branch
          %283 = sbr.rel (%p281) target = $region52
        $region51: #{tpu_custom_call.1} parent=47 // pred_region
          %s284 = smul.u32 4, %s18
          %p285 = scmp.lt.s32.totalorder %s284, 7
          %s286 = scalar_select %p285, %s284, 7
          %s287 = smul.addr %s286, 8
          %s288 = scalar_lea.vmem %s0, %s287
          %s289 = smul.u32 4, %s18
        $region52: #{tpu_custom_call.1} parent=47 // pred_fallthru
          _
      $region48: #{tpu_custom_call.1} parent=5 // pred_fallthru
        _
      %p290 = scmp.le.s32.totalorder 1, %s18
      %p291 = scmp.lt.s32.totalorder %s18, 3
      %p292 = pnand %p290, %p291
      %p293 = pneg %p292
      // Predicated region
      $region53: #{tpu_custom_call.1} parent=5 // pred_check
        _
      $region54: #{tpu_custom_call.1} parent=5 // pred_check_branch
        %295 = sbr.rel (%p292) target = $region56
      $region55: #{tpu_custom_call.1} parent=5 // pred_region
        %s296 = ssub.s32 %s18, 1
        %s297 = smul.u32 4, %s23
        %p298 = scmp.lt.s32.totalorder %s297, 7
        %s299 = scalar_select %p298, %s297, 7
        %s300 = smul.addr %s299, 8
        %s301 = scalar_lea.vmem %s0, %s300
        %p302 = pneg %p44
        %p303 = pneg %p41
        %p304 = pneg %p65
        %p305 = pneg %p62
        %p306 = pneg %p86
        %p307 = pneg %p83
        %p308 = pneg %p107
        %p309 = pneg %p104
        %p310 = pneg %p128
        %p311 = pneg %p125
        %p312 = pneg %p149
        %p313 = pneg %p146
        %p314 = pneg %p170
        %p315 = pneg %p167
        %p316 = pneg %p191
        %p317 = pneg %p188
        %p318 = pneg %p212
        %p319 = pneg %p209
        %p320 = pneg %p238
        %p321 = pneg %p235
        %s322 = sand.u32 %s225, 1
        %s323 = scalar_lea.sflag [#allocation3], %s322
        %s324 = sand.u32 %s225, 1
        %s325 = smul.addr %s324, 32
        %s326 = scalar_lea.vmem [#allocation2], %s325
        %s327 = smul.u32 4, %s23
        %p328 = scmp.lt.s32.totalorder %s327, 7
        %s329 = scalar_select %p328, %s327, 7
        %s330 = smul.addr %s329, 8
        %s331 = scalar_lea.vmem %s0, %s330
        %s332 = smul.u32 4, %s23
        %s333 = smul.u32 4, %s23
        %v335 = vld [vmem:[%s331] sm:$0xff]
        %v336 = vld [vmem:[%s331 + $0x8] sm:$0xff]
        %v337 = vld [vmem:[%s331 + $0x10] sm:$0xff]
        %v338 = vld [vmem:[%s331 + $0x18] sm:$0xff]
        %v339 = vpack.c.bf16 %v336, %v335
        %v340 = vpack.c.bf16 %v338, %v337
        %v341 = vld [vmem:[%s1] sm:$0xf]
        %v342 = vld [vmem:[%s1 + $0x4] sm:$0xf]
        %v343 = vld [vmem:[%s1 + $0x8] sm:$0xf]
        %v344 = vld [vmem:[%s1 + $0xc] sm:$0xf]
        %v345 = vld [vmem:[%s2] sm:$0x1]
        %v347 = vlaneseq
        %v348 = vshrl.u32 %v347, 7
        %v349 = vsub.s32 0, %v348
        %v350 = vrot.slane %v345, %v349
        %v356 = vunpack.c.l.b16 %v341
        %v357 = vunpack.c.l.b16 %v342
        %v358 = vunpack.c.l.b16 %v343
        %v359 = vunpack.c.l.b16 %v344
        %v360 = vpack.c.b16 %v357, %v356
        %v361 = vpack.c.b16 %v359, %v358
        %vm364 = vcmask 261120
        %v366 = vsel %vm364, %v339, 0
        %v369 = vsel %vm364, %v340, 0
        %371 = vmatprep.subr.bf16.mxu0 0
        %372 = vmatpush1.bf16.msra.mxu0 %v360
        %373 = vmatprep.subr.bf16.mxu0 0
        %374 = vmatpush1.bf16.msra.mxu0 %v361
        %375 = vmatprep.subr.bf16.mxu0 0
        %376 = vmatpush1.bf16.msra.mxu0 0
        %377 = vmatprep.subr.bf16.mxu0 0
        %378 = vmatpush1.bf16.msra.mxu0 0
        %379 = vmatprep.subr.bf16.mxu0 0
        %380 = vmatpush1.bf16.msra.mxu0 0
        %381 = vmatprep.subr.bf16.mxu0 0
        %382 = vmatpush1.bf16.msra.mxu0 0
        %383 = vmatprep.subr.bf16.mxu0 0
        %384 = vmatpush1.bf16.msra.mxu0 0
        %385 = vmatprep.subr.bf16.mxu0 0
        %386 = vmatpush1.bf16.msra.mxu0 0
        %387 = vmatprep.subr.bf16.mxu0 0
        %388 = vmatpush1.bf16.msra.mxu0 0
        %389 = vmatprep.subr.bf16.mxu0 0
        %390 = vmatpush1.bf16.msra.mxu0 0
        %391 = vmatprep.subr.bf16.mxu0 0
        %392 = vmatpush1.bf16.msra.mxu0 0
        %393 = vmatprep.subr.bf16.mxu0 0
        %394 = vmatpush1.bf16.msra.mxu0 0
        %395 = vmatprep.subr.bf16.mxu0 0
        %396 = vmatpush1.bf16.msra.mxu0 0
        %397 = vmatprep.subr.bf16.mxu0 0
        %398 = vmatpush1.bf16.msra.mxu0 0
        %399 = vmatprep.subr.bf16.mxu0 0
        %400 = vmatpush1.bf16.msra.mxu0 0
        %401 = vmatprep.subr.bf16.mxu0 0
        %402 = vmatpush1.bf16.msra.mxu0 0
        %403 = vmatprep.mubr.bf16.mxu0 0
        %404 = vmatmul.mubr.bf16.gmra.mrb[0].mxu0 %v366
        %v405 = vpop.f32.mrb[0].mxu0
        %v406 = vadd.f32 %v350, %v405
        %v407 = vpop.f32.mrb[0].mxu0
        %v408 = vpop.f32.mrb[0].mxu0
        %v409 = vadd.f32 %v350, %v408
        %v410 = vpop.f32.mrb[0].mxu0
        %411 = vmatprep.mubr.bf16.mxu0 0
        %412 = vmatmul.mubr.bf16.gmra.mrb[0].mxu0 %v369
        %v413 = vpop.f32.mrb[0].mxu0
        %v414 = vadd.f32 %v350, %v413
        %v415 = vpop.f32.mrb[0].mxu0
        %v416 = vpop.f32.mrb[0].mxu0
        %v417 = vadd.f32 %v350, %v416
        %v418 = vpop.f32.mrb[0].mxu0
        %419 = vdwg.mxu0
        %v420 = vmax.f32 %v406, 0.0
        %v421 = vmax.f32 %v409, 0.0
        %v422 = vmax.f32 %v414, 0.0
        %v423 = vmax.f32 %v417, 0.0
        %v424 = vpack.c.bf16 %v421, %v420
        %v425 = vpack.c.bf16 %v423, %v422
        %v426 = vld [vmem:[%s3] sm:$0xf]
        %v427 = vld [vmem:[%s3 + $0x4] sm:$0xf]
        %v428 = vld [vmem:[%s3 + $0x8] sm:$0xf]
        %v429 = vld [vmem:[%s3 + $0xc] sm:$0xf]
        %v430 = vld [vmem:[%s3 + $0x10] sm:$0xf]
        %v431 = vld [vmem:[%s3 + $0x14] sm:$0xf]
        %v432 = vld [vmem:[%s3 + $0x18] sm:$0xf]
        %v433 = vld [vmem:[%s3 + $0x1c] sm:$0xf]
        %v434 = vld [vmem:[%s4] sm:$0x1]
        %v436 = vlaneseq
        %v437 = vshrl.u32 %v436, 7
        %v438 = vsub.s32 0, %v437
        %v439 = vrot.slane %v434, %v438
        %v449 = vunpack.c.l.b16 %v426
        %v450 = vunpack.c.l.b16 %v427
        %v451 = vunpack.c.l.b16 %v428
        %v452 = vunpack.c.l.b16 %v429
        %v453 = vunpack.c.l.b16 %v430
        %v454 = vunpack.c.l.b16 %v431
        %v455 = vunpack.c.l.b16 %v432
        %v456 = vunpack.c.l.b16 %v433
        %v457 = vpack.c.b16 %v450, %v449
        %v458 = vpack.c.b16 %v452, %v451
        %v459 = vpack.c.b16 %v454, %v453
        %v460 = vpack.c.b16 %v456, %v455
        %vm465 = vcmask 523264
        %v467 = vsel %vm465, %v424, 0
        %v470 = vsel %vm465, %v425, 0
        %472 = vmatprep.subr.bf16.mxu0 0
        %473 = vmatpush1.bf16.msra.mxu0 %v457
        %474 = vmatprep.subr.bf16.mxu0 0
        %475 = vmatpush1.bf16.msra.mxu0 %v458
        %476 = vmatprep.subr.bf16.mxu0 0
        %477 = vmatpush1.bf16.msra.mxu0 %v459
        %478 = vmatprep.subr.bf16.mxu0 0
        %479 = vmatpush1.bf16.msra.mxu0 %v460
        %480 = vmatprep.subr.bf16.mxu0 0
        %481 = vmatpush1.bf16.msra.mxu0 0
        %482 = vmatprep.subr.bf16.mxu0 0
        %483 = vmatpush1.bf16.msra.mxu0 0
        %484 = vmatprep.subr.bf16.mxu0 0
        %485 = vmatpush1.bf16.msra.mxu0 0
        %486 = vmatprep.subr.bf16.mxu0 0
        %487 = vmatpush1.bf16.msra.mxu0 0
        %488 = vmatprep.subr.bf16.mxu0 0
        %489 = vmatpush1.bf16.msra.mxu0 0
        %490 = vmatprep.subr.bf16.mxu0 0
        %491 = vmatpush1.bf16.msra.mxu0 0
        %492 = vmatprep.subr.bf16.mxu0 0
        %493 = vmatpush1.bf16.msra.mxu0 0
        %494 = vmatprep.subr.bf16.mxu0 0
        %495 = vmatpush1.bf16.msra.mxu0 0
        %496 = vmatprep.subr.bf16.mxu0 0
        %497 = vmatpush1.bf16.msra.mxu0 0
        %498 = vmatprep.subr.bf16.mxu0 0
        %499 = vmatpush1.bf16.msra.mxu0 0
        %500 = vmatprep.subr.bf16.mxu0 0
        %501 = vmatpush1.bf16.msra.mxu0 0
        %502 = vmatprep.subr.bf16.mxu0 0
        %503 = vmatpush1.bf16.msra.mxu0 0
        %504 = vmatprep.mubr.bf16.mxu0 0
        %505 = vmatmul.mubr.bf16.gmra.mrb[0].mxu0 %v467
        %v506 = vpop.f32.mrb[0].mxu0
        %v507 = vadd.f32 %v439, %v506
        %v508 = vpop.f32.mrb[0].mxu0
        %v509 = vpop.f32.mrb[0].mxu0
        %v510 = vadd.f32 %v439, %v509
        %v511 = vpop.f32.mrb[0].mxu0
        %512 = vmatprep.mubr.bf16.mxu0 0
        %513 = vmatmul.mubr.bf16.gmra.mrb[0].mxu0 %v470
        %v514 = vpop.f32.mrb[0].mxu0
        %v515 = vadd.f32 %v439, %v514
        %v516 = vpop.f32.mrb[0].mxu0
        %v517 = vpop.f32.mrb[0].mxu0
        %v518 = vadd.f32 %v439, %v517
        %v519 = vpop.f32.mrb[0].mxu0
        %520 = vdwg.mxu0
        %v521 = vmax.f32 %v507, 0.0
        %v522 = vmax.f32 %v510, 0.0
        %v523 = vmax.f32 %v515, 0.0
        %v524 = vmax.f32 %v518, 0.0
        %v525 = vpack.c.bf16 %v522, %v521
        %v526 = vpack.c.bf16 %v524, %v523
        %v527 = vld [vmem:[%s5] sm:$0xf]
        %v528 = vld [vmem:[%s5 + $0x4] sm:$0xf]
        %v529 = vld [vmem:[%s5 + $0x8] sm:$0xf]
        %v530 = vld [vmem:[%s5 + $0xc] sm:$0xf]
        %v531 = vld [vmem:[%s5 + $0x10] sm:$0xf]
        %v532 = vld [vmem:[%s5 + $0x14] sm:$0xf]
        %v533 = vld [vmem:[%s5 + $0x18] sm:$0xf]
        %v534 = vld [vmem:[%s5 + $0x1c] sm:$0xf]
        %v535 = vld [vmem:[%s5 + $0x20] sm:$0xf]
        %v536 = vld [vmem:[%s5 + $0x24] sm:$0xf]
        %v537 = vld [vmem:[%s5 + $0x28] sm:$0xf]
        %v538 = vld [vmem:[%s5 + $0x2c] sm:$0xf]
        %v539 = vld [vmem:[%s5 + $0x30] sm:$0xf]
        %v540 = vld [vmem:[%s5 + $0x34] sm:$0xf]
        %v541 = vld [vmem:[%s5 + $0x38] sm:$0xf]
        %v542 = vld [vmem:[%s5 + $0x3c] sm:$0xf]
        %v543 = vld [vmem:[%s6] sm:$0x1]
        %v545 = vlaneseq
        %v546 = vshrl.u32 %v545, 7
        %v547 = vsub.s32 0, %v546
        %v548 = vrot.slane %v543, %v547
        %v566 = vunpack.c.l.b16 %v527
        %v567 = vunpack.c.l.b16 %v528
        %v568 = vunpack.c.l.b16 %v529
        %v569 = vunpack.c.l.b16 %v530
        %v570 = vunpack.c.l.b16 %v531
        %v571 = vunpack.c.l.b16 %v532
        %v572 = vunpack.c.l.b16 %v533
        %v573 = vunpack.c.l.b16 %v534
        %v574 = vunpack.c.l.b16 %v535
        %v575 = vunpack.c.l.b16 %v536
        %v576 = vunpack.c.l.b16 %v537
        %v577 = vunpack.c.l.b16 %v538
        %v578 = vunpack.c.l.b16 %v539
        %v579 = vunpack.c.l.b16 %v540
        %v580 = vunpack.c.l.b16 %v541
        %v581 = vunpack.c.l.b16 %v542
        %v582 = vpack.c.b16 %v567, %v566
        %v583 = vpack.c.b16 %v569, %v568
        %v584 = vpack.c.b16 %v571, %v570
        %v585 = vpack.c.b16 %v573, %v572
        %v586 = vpack.c.b16 %v575, %v574
        %v587 = vpack.c.b16 %v577, %v576
        %v588 = vpack.c.b16 %v579, %v578
        %v589 = vpack.c.b16 %v581, %v580
        %598 = vmatprep.subr.bf16.mxu0 0
        %599 = vmatpush1.bf16.msra.mxu0 %v582
        %600 = vmatprep.subr.bf16.mxu0 0
        %601 = vmatpush1.bf16.msra.mxu0 %v583
        %602 = vmatprep.subr.bf16.mxu0 0
        %603 = vmatpush1.bf16.msra.mxu0 %v584
        %604 = vmatprep.subr.bf16.mxu0 0
        %605 = vmatpush1.bf16.msra.mxu0 %v585
        %606 = vmatprep.subr.bf16.mxu0 0
        %607 = vmatpush1.bf16.msra.mxu0 %v586
        %608 = vmatprep.subr.bf16.mxu0 0
        %609 = vmatpush1.bf16.msra.mxu0 %v587
        %610 = vmatprep.subr.bf16.mxu0 0
        %611 = vmatpush1.bf16.msra.mxu0 %v588
        %612 = vmatprep.subr.bf16.mxu0 0
        %613 = vmatpush1.bf16.msra.mxu0 %v589
        %614 = vmatprep.subr.bf16.mxu0 0
        %615 = vmatpush1.bf16.msra.mxu0 0
        %616 = vmatprep.subr.bf16.mxu0 0
        %617 = vmatpush1.bf16.msra.mxu0 0
        %618 = vmatprep.subr.bf16.mxu0 0
        %619 = vmatpush1.bf16.msra.mxu0 0
        %620 = vmatprep.subr.bf16.mxu0 0
        %621 = vmatpush1.bf16.msra.mxu0 0
        %622 = vmatprep.subr.bf16.mxu0 0
        %623 = vmatpush1.bf16.msra.mxu0 0
        %624 = vmatprep.subr.bf16.mxu0 0
        %625 = vmatpush1.bf16.msra.mxu0 0
        %626 = vmatprep.subr.bf16.mxu0 0
        %627 = vmatpush1.bf16.msra.mxu0 0
        %628 = vmatprep.subr.bf16.mxu0 0
        %629 = vmatpush1.bf16.msra.mxu0 0
        %630 = vmatprep.mubr.bf16.mxu0 0
        %631 = vmatmul.mubr.bf16.gmra.mrb[0].mxu0 %v525
        %v632 = vpop.f32.mrb[0].mxu0
        %v633 = vadd.f32 %v548, %v632
        %v634 = vpop.f32.mrb[0].mxu0
        %v635 = vpop.f32.mrb[0].mxu0
        %v636 = vadd.f32 %v548, %v635
        %v637 = vpop.f32.mrb[0].mxu0
        %638 = vmatprep.mubr.bf16.mxu0 0
        %639 = vmatmul.mubr.bf16.gmra.mrb[0].mxu0 %v526
        %v640 = vpop.f32.mrb[0].mxu0
        %v641 = vadd.f32 %v548, %v640
        %v642 = vpop.f32.mrb[0].mxu0
        %v643 = vpop.f32.mrb[0].mxu0
        %v644 = vadd.f32 %v548, %v643
        %v645 = vpop.f32.mrb[0].mxu0
        %646 = vdwg.mxu0
        %v647 = vmax.f32 %v633, 0.0
        %v648 = vmax.f32 %v636, 0.0
        %v649 = vmax.f32 %v641, 0.0
        %v650 = vmax.f32 %v644, 0.0
        %v651 = vpack.c.bf16 %v648, %v647
        %v652 = vpack.c.bf16 %v650, %v649
        %v653 = vld [vmem:[%s7] sm:$0xf]
        %v654 = vld [vmem:[%s7 + $0x4] sm:$0xf]
        %v655 = vld [vmem:[%s7 + $0x8] sm:$0xf]
        %v656 = vld [vmem:[%s7 + $0xc] sm:$0xf]
        %v657 = vld [vmem:[%s7 + $0x10] sm:$0xf]
        %v658 = vld [vmem:[%s7 + $0x14] sm:$0xf]
        %v659 = vld [vmem:[%s7 + $0x18] sm:$0xf]
        %v660 = vld [vmem:[%s7 + $0x1c] sm:$0xf]
        %v661 = vld [vmem:[%s8] sm:$0x1]
        %v663 = vlaneseq
        %v664 = vshrl.u32 %v663, 7
        %v665 = vsub.s32 0, %v664
        %v666 = vrot.slane %v661, %v665
        %v676 = vunpack.c.l.b16 %v653
        %v677 = vunpack.c.l.b16 %v654
        %v678 = vunpack.c.l.b16 %v655
        %v679 = vunpack.c.l.b16 %v656
        %v680 = vunpack.c.l.b16 %v657
        %v681 = vunpack.c.l.b16 %v658
        %v682 = vunpack.c.l.b16 %v659
        %v683 = vunpack.c.l.b16 %v660
        %v684 = vpack.c.b16 %v677, %v676
        %v685 = vpack.c.b16 %v679, %v678
        %v686 = vpack.c.b16 %v681, %v680
        %v687 = vpack.c.b16 %v683, %v682
        %v693 = vsel %vm465, %v651, 0
        %v696 = vsel %vm465, %v652, 0
        %698 = vmatprep.subr.bf16.mxu0 0
        %699 = vmatpush1.bf16.msra.mxu0 %v684
        %700 = vmatprep.subr.bf16.mxu0 0
        %701 = vmatpush1.bf16.msra.mxu0 %v685
        %702 = vmatprep.subr.bf16.mxu0 0
        %703 = vmatpush1.bf16.msra.mxu0 %v686
        %704 = vmatprep.subr.bf16.mxu0 0
        %705 = vmatpush1.bf16.msra.mxu0 %v687
        %706 = vmatprep.subr.bf16.mxu0 0
        %707 = vmatpush1.bf16.msra.mxu0 0
        %708 = vmatprep.subr.bf16.mxu0 0
        %709 = vmatpush1.bf16.msra.mxu0 0
        %710 = vmatprep.subr.bf16.mxu0 0
        %711 = vmatpush1.bf16.msra.mxu0 0
        %712 = vmatprep.subr.bf16.mxu0 0
        %713 = vmatpush1.bf16.msra.mxu0 0
        %714 = vmatprep.subr.bf16.mxu0 0
        %715 = vmatpush1.bf16.msra.mxu0 0
        %716 = vmatprep.subr.bf16.mxu0 0
        %717 = vmatpush1.bf16.msra.mxu0 0
        %718 = vmatprep.subr.bf16.mxu0 0
        %719 = vmatpush1.bf16.msra.mxu0 0
        %720 = vmatprep.subr.bf16.mxu0 0
        %721 = vmatpush1.bf16.msra.mxu0 0
        %722 = vmatprep.subr.bf16.mxu0 0
        %723 = vmatpush1.bf16.msra.mxu0 0
        %724 = vmatprep.subr.bf16.mxu0 0
        %725 = vmatpush1.bf16.msra.mxu0 0
        %726 = vmatprep.subr.bf16.mxu0 0
        %727 = vmatpush1.bf16.msra.mxu0 0
        %728 = vmatprep.subr.bf16.mxu0 0
        %729 = vmatpush1.bf16.msra.mxu0 0
        %730 = vmatprep.mubr.bf16.mxu0 0
        %731 = vmatmul.mubr.bf16.gmra.mrb[0].mxu0 %v693
        %v732 = vpop.f32.mrb[0].mxu0
        %v733 = vadd.f32 %v666, %v732
        %v734 = vpop.f32.mrb[0].mxu0
        %v735 = vpop.f32.mrb[0].mxu0
        %v736 = vadd.f32 %v666, %v735
        %v737 = vpop.f32.mrb[0].mxu0
        %738 = vmatprep.mubr.bf16.mxu0 0
        %739 = vmatmul.mubr.bf16.gmra.mrb[0].mxu0 %v696
        %v740 = vpop.f32.mrb[0].mxu0
        %v741 = vadd.f32 %v666, %v740
        %v742 = vpop.f32.mrb[0].mxu0
        %v743 = vpop.f32.mrb[0].mxu0
        %v744 = vadd.f32 %v666, %v743
        %v745 = vpop.f32.mrb[0].mxu0
        %746 = vdwg.mxu0
        %747 = vmax.xlane.f32.xlu0 %v733
        %v748 = vpop.xlane.xlu0 %747
        %749 = vmax.xlane.f32.xlu0 %v736
        %v750 = vpop.xlane.xlu0 %749
        %751 = vmax.xlane.f32.xlu0 %v741
        %v752 = vpop.xlane.xlu0 %751
        %753 = vmax.xlane.f32.xlu0 %v744
        %v754 = vpop.xlane.xlu0 %753
        %v755 = vsub.f32 %v733, %v748
        %v756 = vsub.f32 %v736, %v750
        %v757 = vsub.f32 %v741, %v752
        %v758 = vsub.f32 %v744, %v754
        %v759 = vmul.f32 %v755, 1.442695
        %v760 = vpow.pop %v759
        %v761 = vmul.f32 %v756, 1.442695
        %v762 = vpow.pop %v761
        %v763 = vmul.f32 %v757, 1.442695
        %v764 = vpow.pop %v763
        %v765 = vmul.f32 %v758, 1.442695
        %v766 = vpow.pop %v765
        %767 = vadd.xlane.f32.xlu0 %v760
        %v768 = vpop.xlane.xlu0 %767
        %769 = vadd.xlane.f32.xlu0 %v762
        %v770 = vpop.xlane.xlu0 %769
        %771 = vadd.xlane.f32.xlu0 %v764
        %v772 = vpop.xlane.xlu0 %771
        %773 = vadd.xlane.f32.xlu0 %v766
        %v774 = vpop.xlane.xlu0 %773
        %v775 = vrcp.pop %v768
        %v776 = vmul.f32 %v760, %v775
        %v777 = vrcp.pop %v770
        %v778 = vmul.f32 %v762, %v777
        %v779 = vrcp.pop %v772
        %v780 = vmul.f32 %v764, %v779
        %v781 = vrcp.pop %v774
        %v782 = vmul.f32 %v766, %v781
        %783 = vst [vmem:[%s326] sm:$0xff] %v776
        %784 = vst [vmem:[%s326 + $0x8] sm:$0xff] %v778
        %785 = vst [vmem:[%s326 + $0x10] sm:$0xff] %v780
        %786 = vst [vmem:[%s326 + $0x18] sm:$0xff] %v782
        %s787 = sand.u32 %s225, 1
        %s788 = scalar_lea.sflag [#allocation3], %s787
        %s789 = sand.u32 %s225, 1
        %s790 = smul.addr %s789, 32
        %s791 = scalar_lea.vmem [#allocation2], %s790
        // Predicated region
        $region57: #{tpu_custom_call.1} parent=55 // pred_check
          %p792 = pneg %p235
        $region58: #{tpu_custom_call.1} parent=55 // pred_check_branch
          %794 = sbr.rel (%p792) target = $region60
        $region59: #{tpu_custom_call.1} parent=55 // pred_region
          %s795 = smul.u32 4, %s23
          %s797 = ssub.s32 512, 512
          %798 = vsyncadd %s788, %s797
          %s799 = smul.addr %s795, 128
          %s800 = scalar_lea.hbm %s9, %s799
          %s801 = sshll.u32 %s791, 4
          %s802 = int_to_ptr.vmem [resolvable:$true] %s801
          %807 = dma.vmem_to_hbm [thread:$0]  %s802, 512, %s800, %s788, 128, 128, 8
        $region60: #{tpu_custom_call.1} parent=55 // pred_fallthru
          _
      $region56: #{tpu_custom_call.1} parent=5 // pred_fallthru
        _
      %p808 = scmp.le.s32.totalorder 2, %s18
      // Predicated region
      $region61: #{tpu_custom_call.1} parent=5 // pred_check
        %p809 = pneg %p808
      $region62: #{tpu_custom_call.1} parent=5 // pred_check_branch
        %811 = sbr.rel (%p809) target = $region64
      $region63: #{tpu_custom_call.1} parent=5 // pred_region
        %s812 = ssub.s32 %s18, 2
        // Predicated region
        $region65: #{tpu_custom_call.1} parent=63 // pred_check
          %p813 = pneg %p241
        $region66: #{tpu_custom_call.1} parent=63 // pred_check_branch
          %815 = sbr.rel (%p813) target = $region68
        $region67: #{tpu_custom_call.1} parent=63 // pred_region
          %s816 = sand.u32 %s226, 1
          %s817 = scalar_lea.sflag [#allocation3], %s816
          %s818 = sand.u32 %s226, 1
          %s819 = smul.addr %s818, 32
          %s820 = scalar_lea.vmem [#allocation2], %s819
          %821 = dma.done %s817, 512
        $region68: #{tpu_custom_call.1} parent=63 // pred_fallthru
          _
      $region64: #{tpu_custom_call.1} parent=5 // pred_fallthru
        _
    $region6: #{tpu_custom_call.1} parent=1 // loop_footer
      %s22 = sadd.s32 1, %s18
    $region7: #{tpu_custom_call.1} parent=1 // loop_footer_branch
      %17 = sbr.rel target = $region3
    $region8: #{tpu_custom_call.1} parent=1 // loop_exit
      _
    %822 = vsyncpa [#allocation3], 1
    %s823 = scalar_lea.sflag [#allocation3], 1
    %824 = vsyncpa %s823, 1

</llo_original>
